<compile_context>
chip_gen: v7x
topology: tpu7x:2x2x1
jax: 0.10.0
libtpu: 0.0.40
codegen_flags: <defaults>
</compile_context>

<pallas_src>
import functools
import math

import jax
import jax.numpy as jnp
from jax.experimental import pallas as pl
from jax.experimental.pallas import tpu as pltpu


def _round_up(x, m):
    return (x + m - 1) // m * m


def _vmem_capacity_bytes():
    try:
        return int(pltpu.get_tpu_info().vmem_capacity_bytes)
    except Exception:
        return 128 * 1024 * 1024


def _num_tensorcores():
    """Best-effort TensorCores-per-Pallas-device (megacore) detection."""
    try:
        info = pltpu.get_tpu_info()
        for attr in ("num_cores", "core_count", "num_tensor_cores",
                     "tensor_cores_per_chip"):
            v = getattr(info, attr, None)
            if isinstance(v, int) and v > 0:
                return v
    except Exception:
        pass
    try:
        kind = jax.devices()[0].device_kind.lower()
        if "v4" in kind or "v7" in kind:
            return 2
    except Exception:
        pass
    return 1


def _choose_time_tile(S, bt, kc_pad, h_t, budget_bytes, max_ts):
    """Largest time tile whose VMEM working set fits the budget.

    Accounts for double-buffered X/out blocks, the f32 matmul intermediate g,
    the f32 gate temporaries, the a/b scratches, and fixed-size terms
    (double-buffered weights/bias, hidden-state blocks).
    """
    per_step = bt * (
        2 * 2 * kc_pad       # X block, bf16, double-buffered
        + 2 * 2 * h_t        # out block, bf16, double-buffered
        + 2 * 4 * h_t        # a/b scratch, f32
        + 4 * 2 * h_t        # fused matmul intermediate g, f32, 2*h_t cols
        + 2 * 4 * h_t        # z/f value temporaries before the scratch stores
    )
    fixed = (2 * (kc_pad * 2 * h_t * 2 + 2 * h_t * 4)   # W + b, double-buffered
             + 3 * bt * h_t * 4                          # h0 (x2 buf) + h_carry
             + 2 * bt * h_t * 4)                         # h_n out block (f32, x2)
    avail = max(budget_bytes - fixed, per_step)
    return int(max(1, min(S, avail // per_step, max_ts)))


# ---------------------------------------------------------------------------
# Pallas kernel: one QRNN layer time-chunk (fused conv gates + forget-mult)
# ---------------------------------------------------------------------------
def _qrnn_layer_kernel(x_ref, w_ref, b_ref, h0_ref, out_ref, hn_ref,
                       a_scr, b_scr, h_carry, *, seq_len, mask_tail, unroll):
    # x_ref   : (Ts, Bt, KC_pad)   bf16  im2col'd input, one time chunk
    # w_ref   : (1, KC_pad, 2*Ht)  bf16  fused [Wz | Wf] for this H tile
    # b_ref   : (1, 1, 2*Ht)       f32   fused [bz | bf]
    # h0_ref  : (Bt, Ht)           f32   initial hidden state (this tile)
    # out_ref : (Ts, Bt, Ht)       bf16  hidden states for this chunk
    # hn_ref  : (Bt, Ht)           f32   final state (written at last chunk)
    # a_scr/b_scr : (Ts, Bt, Ht)   f32   a_t = f*z, b_t = 1-f
    # h_carry : (Bt, Ht)           f32   state carried across time chunks
    tc = pl.program_id(2)

    @pl.when(tc == 0)
    def _init():
        h_carry[...] = h0_ref[...]

    tsz, bt, kc = x_ref.shape
    h_t = out_ref.shape[-1]

    # Single fused MXU pass for both gates (bf16 in, f32 accumulate).
    x = x_ref[...].reshape(tsz * bt, kc)
    g = jnp.dot(x, w_ref[0], preferred_element_type=jnp.float32) + b_ref[0]

    # sigmoid(x) = 0.5*tanh(0.5*x) + 0.5 : one EUP op instead of exp + recip.
    zp = g[:, :h_t]
    z = zp * (0.5 * jnp.tanh(0.851 * zp) + 0.5)      # QuickGELU(z)
    f = 0.5 * jnp.tanh(0.5 * g[:, h_t:]) + 0.5       # sigmoid(f)

    z = z.reshape(tsz, bt, h_t)
    f = f.reshape(tsz, bt, h_t)

    if mask_tail:
        # Padded tail timesteps: force f=0 so a=0, b=1 and h is unchanged,
        # keeping h_carry == h_{S-1} for the hn output.
        t_ids = jax.lax.broadcasted_iota(jnp.int32, (tsz, bt, h_t), 0)
        f = jnp.where(tc * tsz + t_ids < seq_len, f, 0.0)

    # Precompute a_t = f*z and b_t = 1-f in the fully parallel phase so the
    # serial scan is only two dependent VPU ops per timestep (mul -> add).
    a_scr[...] = f * z
    b_scr[...] = 1.0 - f

    def body(t, h_prev):
        h_new = a_scr[t] + b_scr[t] * h_prev
        out_ref[t] = h_new.astype(out_ref.dtype)
        return h_new

    h_carry[...] = jax.lax.fori_loop(0, tsz, body, h_carry[...], unroll=unroll)

    @pl.when(tc == pl.num_programs(2) - 1)
    def _final():
        hn_ref[...] = h_carry[...]


def qrnn_layer_forward(X, Wz, bz, Wf, bf, lookback_window, lookahead_window,
                       hidden=None, time_tile=None, force_tiles=None):
    """One QRNNLayer forward.

    X: (S, B, C) -> (H_out (S, B, H) bf16, h_n (B, H) f32).
    """
    S, B, C = X.shape
    H = Wz.shape[0]
    K = lookback_window + 1 + lookahead_window
    assert Wz.shape == (H, C, K) and Wf.shape == (H, C, K)

    n_cores = _num_tensorcores()
    vmem_cap = _vmem_capacity_bytes()
    if vmem_cap <= 80 * 1024 * 1024:           # v7x-class: 64 MiB / TensorCore
        budget, vmem_limit, max_ts = 8 << 20, 30 << 20, 512
    else:                                       # v5e / v6e: 128 MiB
        budget, vmem_limit, max_ts = 24 << 20, 64 << 20, 2048

    # ---- padded / tiled geometry -----------------------------------------
    B_pad = _round_up(B, 16)                    # bf16-friendly sublane packing
    H_pad = _round_up(H, 128)
    KC = K * C
    KC_pad = _round_up(KC, 128)

    # Megacore split: prefer the hidden axis (recurrence is elementwise in H);
    # only split batch if each tile keeps >= 64 rows; never split on 1-TC parts.
    n_bt, n_ht = 1, 1
    if force_tiles is not None:
        n_bt, n_ht = force_tiles
    elif n_cores >= 2:
        if H_pad >= 256 and (H_pad // 128) % 2 == 0:
            n_ht = 2
        elif B_pad >= 128 and B_pad % 32 == 0:
            n_bt = 2
    assert H_pad % (n_ht * 128) == 0 and B_pad % (n_bt * 16) == 0
    Bt = B_pad // n_bt
    Ht = H_pad // n_ht

    Ts = int(time_tile) if time_tile is not None else _choose_time_tile(
        S, Bt, KC_pad, Ht, budget, max_ts)
    n_tc = -(-S // Ts)
    S_pad = n_tc * Ts
    mask_tail = S_pad != S

    # fori_loop unroll bounded by vreg pressure (~4 live (Bt, Ht) slabs/iter).
    vregs_per_step = 4 * max(1, Bt // 8) * max(1, Ht // 128)
    unroll = int(max(1, min(8, 64 // vregs_per_step, Ts)))

    # ---- layout glue (JAX): causal/lookahead pad + im2col + alignment pad --
    # TODO(synk): fold the K-tap im2col into the kernel (halo DMA + K shifted
    #             matmuls) so X is only read once from HBM.
    Xp = jnp.pad(X, ((lookback_window, lookahead_window + (S_pad - S)),
                     (0, 0), (0, 0)))
    taps = [Xp[k:k + S_pad] for k in range(K)]          # each (S_pad, B, C)
    Xim = jnp.concatenate(taps, axis=-1)                 # (S_pad, B, K*C)
    Xim = jnp.pad(Xim, ((0, 0), (0, B_pad - B), (0, KC_pad - KC)))
    Xim = Xim.astype(jnp.bfloat16)

    # Flatten conv weights to (k*C + c, H), pad, and regroup so every H tile
    # gets a contiguous fused [Wz_tile | Wf_tile] block.
    def _flat(Wg):
        Wg2 = jnp.transpose(Wg, (2, 1, 0)).reshape(KC, H)
        return jnp.pad(Wg2, ((0, KC_pad - KC), (0, H_pad - H)))
    Wz_t = _flat(Wz).reshape(KC_pad, n_ht, Ht).transpose(1, 0, 2)
    Wf_t = _flat(Wf).reshape(KC_pad, n_ht, Ht).transpose(1, 0, 2)
    Wcat = jnp.concatenate([Wz_t, Wf_t], axis=2).astype(jnp.bfloat16)
    bz_t = jnp.pad(bz, (0, H_pad - H)).reshape(n_ht, Ht)
    bf_t = jnp.pad(bf, (0, H_pad - H)).reshape(n_ht, Ht)
    bcat = jnp.concatenate([bz_t, bf_t], axis=1)[:, None, :].astype(jnp.float32)

    if hidden is None:
        h0 = jnp.zeros((B_pad, H_pad), jnp.float32)
    else:
        h0 = jnp.pad(hidden.astype(jnp.float32),
                     ((0, B_pad - B), (0, H_pad - H)))

    kernel = functools.partial(_qrnn_layer_kernel, seq_len=S,
                               mask_tail=mask_tail, unroll=unroll)

    h_full, h_n_full = pl.pallas_call(
        kernel,
        out_shape=(
            jax.ShapeDtypeStruct((S_pad, B_pad, H_pad), jnp.bfloat16),
            jax.ShapeDtypeStruct((B_pad, H_pad), jnp.float32),
        ),
        grid_spec=pltpu.PrefetchScalarGridSpec(
            num_scalar_prefetch=0,
            grid=(n_bt, n_ht, n_tc),       # (batch tiles, H tiles, time chunks)
            in_specs=[
                pl.BlockSpec((Ts, Bt, KC_pad), lambda j, h, i: (i, j, 0)),
                pl.BlockSpec((1, KC_pad, 2 * Ht), lambda j, h, i: (h, 0, 0)),
                pl.BlockSpec((1, 1, 2 * Ht), lambda j, h, i: (h, 0, 0)),
                pl.BlockSpec((Bt, Ht), lambda j, h, i: (j, h)),
            ],
            out_specs=(
                pl.BlockSpec((Ts, Bt, Ht), lambda j, h, i: (i, j, h)),
                pl.BlockSpec((Bt, Ht), lambda j, h, i: (j, h)),
            ),
            scratch_shapes=[pltpu.VMEM((Ts, Bt, Ht), jnp.float32),
                            pltpu.VMEM((Ts, Bt, Ht), jnp.float32),
                            pltpu.VMEM((Bt, Ht), jnp.float32)]),
        compiler_params=pltpu.CompilerParams(
            dimension_semantics=("parallel", "parallel", "arbitrary"),
            vmem_limit_bytes=vmem_limit),
    )(Xim, Wcat, bcat, h0)

    H_out = h_full[:S, :B, :H]     # bf16; the next layer re-quantizes anyway
    h_n = h_n_full[:B, :H]         # exact f32 state at t = S-1
    return H_out, h_n


# ---------------------------------------------------------------------------
# QRNN module (plain-JAX parameter container + layer loop)
# ---------------------------------------------------------------------------
def init_qrnn_params(key, input_size, hidden_size, num_layers,
                     lookback_window=1, lookahead_window=0):
    """Deterministic init matching nn.Conv1d defaults: U(-1/sqrt(fan_in), +)."""
    K = lookback_window + 1 + lookahead_window
    params = []
    for layer in range(num_layers):
        c_in = input_size if layer == 0 else hidden_size
        bound = 1.0 / math.sqrt(c_in * K)
        key, k1, k2, k3, k4 = jax.random.split(key, 5)
        params.append(dict(
            Wz=jax.random.uniform(k1, (hidden_size, c_in, K), jnp.float32,
                                  -bound, bound),
            bz=jax.random.uniform(k2, (hidden_size,), jnp.float32, -bound, bound),
            Wf=jax.random.uniform(k3, (hidden_size, c_in, K), jnp.float32,
                                  -bound, bound),
            bf=jax.random.uniform(k4, (hidden_size,), jnp.float32, -bound, bound),
        ))
    return params


def qrnn_forward(params, X, hidden=None, lookback_window=1, lookahead_window=0,
                 time_tile=None, force_tiles=None):
    """QRNN.forward: unidirectional, dropout=0 (eval semantics at p=0)."""
    # TODO(synk): bidirectional and non-zero dropout paths are not implemented
    #             (module defaults: bidirectional=False, dropout=0).
    next_hidden = []
    inp = X
    for i, p in enumerate(params):
        h_init = None if hidden is None else hidden[i]
        inp, h_n = qrnn_layer_forward(inp, p["Wz"], p["bz"], p["Wf"], p["bf"],
                                      lookback_window, lookahead_window,
                                      h_init, time_tile=time_tile,
                                      force_tiles=force_tiles)
        next_hidden.append(h_n)
    next_hidden = jnp.stack(next_hidden, axis=0)  # (num_layers, B, H)
    return inp, next_hidden


# ---------------------------------------------------------------------------
# Pure-JAX reference (mirrors the PyTorch CPUForgetMult path).
# quantize_bf16=True rounds X / conv weights to bf16 (what the kernel's bf16
# MXU pass sees) so the comparison isolates real bugs from bf16 rounding.
# ---------------------------------------------------------------------------
def _ref_layer(X, Wz, bz, Wf, bf, lookback_window, lookahead_window,
               hidden=None, quantize_bf16=False):
    S, B, C = X.shape
    H, _, K = Wz.shape
    X = X.astype(jnp.float32)
    if quantize_bf16:
        X = X.astype(jnp.bfloat16).astype(jnp.float32)
        Wz = Wz.astype(jnp.bfloat16).astype(jnp.float32)
        Wf = Wf.astype(jnp.bfloat16).astype(jnp.float32)
    Xp = jnp.pad(X, ((lookback_window, lookahead_window), (0, 0), (0, 0)))
    # conv1d: Y[t,b,o] = sum_{c,k} W[o,c,k] * Xp[t+k,b,c] + bias[o]
    Xwin = jnp.stack([Xp[k:k + S] for k in range(K)], axis=-1)  # (S,B,C,K)
    Z = jnp.einsum("sbck,ock->sbo", Xwin, Wz) + bz
    F = jnp.einsum("sbck,ock->sbo", Xwin, Wf) + bf
    Z = Z * jax.nn.sigmoid(1.702 * Z)
    F = jax.nn.sigmoid(F)
    prev_h = jnp.zeros((B, H), jnp.float32) if hidden is None else hidden
    outs = []
    for t in range(S):
        prev_h = F[t] * Z[t] + (1.0 - F[t]) * prev_h
        outs.append(prev_h)
    C_out = jnp.stack(outs, axis=0)
    return C_out, C_out[-1]


def _ref_qrnn(params, X, lookback_window=1, lookahead_window=0,
              hidden=None, quantize_bf16=False):
    next_hidden = []
    inp = X
    for i, p in enumerate(params):
        h_init = None if hidden is None else hidden[i]
        inp, h_n = _ref_layer(inp, p["Wz"], p["bz"], p["Wf"], p["bf"],
                              lookback_window, lookahead_window,
                              h_init, quantize_bf16)
        next_hidden.append(h_n)
    return inp, jnp.stack(next_hidden, axis=0)


# ---------------------------------------------------------------------------
if __name__ == "__main__":
    key = jax.random.PRNGKey(0)
    kx, kp, kx2, kp2, kh2, kx3, kp3, kh3 = jax.random.split(key, 8)

    # ---- test 1: small shapes, 2 layers, default (single-chunk) tiling -----
    seq_len, batch, input_size, hidden_size, num_layers = 8, 2, 16, 32, 2
    lookback_window, lookahead_window = 1, 0

    X = jax.random.normal(kx, (seq_len, batch, input_size), jnp.float32)
    params = init_qrnn_params(kp, input_size, hidden_size, num_layers,
                              lookback_window, lookahead_window)

    out, h_n = qrnn_forward(params, X, hidden=None,
                            lookback_window=lookback_window,
                            lookahead_window=lookahead_window)
    out = jax.block_until_ready(out)
    h_n = jax.block_until_ready(h_n)

    assert out.shape == (seq_len, batch, hidden_size)
    assert h_n.shape == (num_layers, batch, hidden_size)

    ref_out_q, ref_hn_q = _ref_qrnn(params, X, lookback_window,
                                    lookahead_window, quantize_bf16=True)
    assert jnp.allclose(out.astype(jnp.float32), ref_out_q, atol=1e-2, rtol=1e-2)
    assert jnp.allclose(h_n, ref_hn_q, atol=1e-2, rtol=1e-2)

    # Full-f32 reference: semantics preserved within bf16 matmul/store precision.
    ref_out32, ref_hn32 = _ref_qrnn(params, X, lookback_window,
                                    lookahead_window, quantize_bf16=False)
    assert jnp.allclose(out.astype(jnp.float32), ref_out32, atol=1e-1, rtol=1e-1)
    assert jnp.allclose(h_n, ref_hn32, atol=1e-1, rtol=1e-1)

    # ---- test 2: multi-chunk time tiling with tail padding, channel/hidden
    #              padding, non-zero initial hidden state --------------------
    seq2, batch2, in2, hid2 = 11, 16, 24, 40
    X2 = jax.random.normal(kx2, (seq2, batch2, in2), jnp.float32)
    params2 = init_qrnn_params(kp2, in2, hid2, 1, 1, 0)
    hidden2 = jax.random.normal(kh2, (1, batch2, hid2), jnp.float32)

    out2, hn2 = qrnn_forward(params2, X2, hidden=hidden2,
                             lookback_window=1, lookahead_window=0,
                             time_tile=4)
    out2 = jax.block_until_ready(out2)
    hn2 = jax.block_until_ready(hn2)

    ref2_out, ref2_hn = _ref_qrnn(params2, X2, 1, 0, hidden=hidden2,
                                  quantize_bf16=True)
    assert out2.shape == (seq2, batch2, hid2)
    assert jnp.allclose(out2.astype(jnp.float32), ref2_out, atol=1e-2, rtol=1e-2)
    assert jnp.allclose(hn2, ref2_hn, atol=1e-2, rtol=1e-2)

    # ---- test 3: exercise the (batch-tile x H-tile) parallel grid axes,
    #              multi-chunk time tiling, and a lookahead window -----------
    seq3, batch3, in3, hid3 = 11, 32, 24, 256
    X3 = jax.random.normal(kx3, (seq3, batch3, in3), jnp.float32)
    params3 = init_qrnn_params(kp3, in3, hid3, 1, 1, 1)
    hidden3 = jax.random.normal(kh3, (1, batch3, hid3), jnp.float32)

    out3, hn3 = qrnn_forward(params3, X3, hidden=hidden3,
                             lookback_window=1, lookahead_window=1,
                             time_tile=4, force_tiles=(2, 2))
    out3 = jax.block_until_ready(out3)
    hn3 = jax.block_until_ready(hn3)

    ref3_out, ref3_hn = _ref_qrnn(params3, X3, 1, 1, hidden=hidden3,
                                  quantize_bf16=True)
    assert out3.shape == (seq3, batch3, hid3)
    assert jnp.allclose(out3.astype(jnp.float32), ref3_out, atol=1e-2, rtol=1e-2)
    assert jnp.allclose(hn3, ref3_hn, atol=1e-2, rtol=1e-2)

    print("KERNEL_OK")
</pallas_src>

<mosaic_0001>
module attributes {stable_mosaic.version = 11 : i64} {
  func.func @_qrnn_layer_kernel(%arg0: i32, %arg1: i32, %arg2: i32, %arg3: memref<8x16x128xbf16, #tpu.memory_space<vmem>>, %arg4: memref<1x128x256xbf16, #tpu.memory_space<vmem>>, %arg5: memref<1x1x256xf32, #tpu.memory_space<vmem>>, %arg6: memref<16x128xf32, #tpu.memory_space<vmem>>, %arg7: memref<8x16x128xbf16, #tpu.memory_space<vmem>>, %arg8: memref<16x128xf32, #tpu.memory_space<vmem>>, %arg9: memref<8x16x128xf32, #tpu.memory_space<vmem>>, %arg10: memref<8x16x128xf32, #tpu.memory_space<vmem>>, %arg11: memref<16x128xf32, #tpu.memory_space<vmem>>) attributes {dimension_semantics = [#tpu.dimension_semantics<parallel>, #tpu.dimension_semantics<parallel>, #tpu.dimension_semantics<arbitrary>], iteration_bounds = array<i64: 1, 1, 1>, scalar_prefetch = 0 : i64, scratch_operands = 3 : i64, tpu.core_type = #tpu.core_type<tc>, window_params = [{transform_indices = @transform_0, window_bounds = array<i64: 8, 16, 128>}, {transform_indices = @transform_1, window_bounds = array<i64: 1, 128, 256>}, {transform_indices = @transform_2, window_bounds = array<i64: 1, 1, 256>}, {transform_indices = @transform_3, window_bounds = array<i64: 16, 128>}, {transform_indices = @transform_4, window_bounds = array<i64: 8, 16, 128>}, {transform_indices = @transform_5, window_bounds = array<i64: 16, 128>}]} {
    %c0_i32 = arith.constant 0 : i32
    %0 = arith.cmpi eq, %arg2, %c0_i32 : i32
    %1 = arith.extui %0 : i1 to i32
    %c0_i32_0 = arith.constant 0 : i32
    %2 = arith.cmpi ne, %1, %c0_i32_0 : i32
    scf.if %2 {
      %c0_77 = arith.constant 0 : index
      %c0_78 = arith.constant 0 : index
      %145 = vector.load %arg6[%c0_77, %c0_78] : memref<16x128xf32, #tpu.memory_space<vmem>>, vector<16x128xf32>
      %c0_79 = arith.constant 0 : index
      %c0_80 = arith.constant 0 : index
      %146 = vector.load %arg11[%c0_79, %c0_80] : memref<16x128xf32, #tpu.memory_space<vmem>>, vector<16x128xf32>
      tpu.vector_store %arg11[%c0_79, %c0_80], %145 {strides = array<i32>} : memref<16x128xf32, #tpu.memory_space<vmem>>, vector<16x128xf32>,
    } else {
    }
    %c0 = arith.constant 0 : index
    %c0_1 = arith.constant 0 : index
    %c0_2 = arith.constant 0 : index
    %3 = vector.load %arg3[%c0, %c0_1, %c0_2] : memref<8x16x128xbf16, #tpu.memory_space<vmem>>, vector<8x16x128xbf16>
    %4 = vector.shape_cast %3 : vector<8x16x128xbf16> to vector<128x128xbf16>
    %c0_3 = arith.constant 0 : index
    %c0_4 = arith.constant 0 : index
    %c0_5 = arith.constant 0 : index
    %5 = vector.load %arg4[%c0_3, %c0_4, %c0_5] : memref<1x128x256xbf16, #tpu.memory_space<vmem>>, vector<1x128x256xbf16>
    %6 = vector.shape_cast %5 : vector<1x128x256xbf16> to vector<128x256xbf16>
    %cst = arith.constant dense<0.000000e+00> : vector<128x256xf32>
    %7 = tpu.matmul %4, %6, %cst {dimension_numbers = #tpu.dot_dimension_numbers<[1], [0], [0], [1], [0, 0, 1, 1], [], []>} : vector<128x128xbf16>, vector<128x256xbf16>, vector<128x256xf32> -> vector<128x256xf32>
    %c0_6 = arith.constant 0 : index
    %c0_7 = arith.constant 0 : index
    %c0_8 = arith.constant 0 : index
    %8 = vector.load %arg5[%c0_6, %c0_7, %c0_8] : memref<1x1x256xf32, #tpu.memory_space<vmem>>, vector<1x1x256xf32>
    %9 = vector.shape_cast %8 : vector<1x1x256xf32> to vector<1x256xf32>
    %10 = vector.broadcast %9 : vector<1x256xf32> to vector<128x256xf32>
    %11 = arith.addf %7, %10 : vector<128x256xf32>
    %12 = vector.extract_strided_slice %11 {offsets = [0, 0], sizes = [128, 128], strides = [1, 1]} : vector<128x256xf32> to vector<128x128xf32>
    %cst_9 = arith.constant 8.510000e-01 : f32
    %13 = vector.broadcast %cst_9 : f32 to vector<128x128xf32>
    %14 = arith.mulf %13, %12 : vector<128x128xf32>
    %15 = math.tanh %14 : vector<128x128xf32>
    %cst_10 = arith.constant 5.000000e-01 : f32
    %16 = vector.broadcast %cst_10 : f32 to vector<128x128xf32>
    %17 = arith.mulf %16, %15 : vector<128x128xf32>
    %cst_11 = arith.constant 5.000000e-01 : f32
    %18 = vector.broadcast %cst_11 : f32 to vector<128x128xf32>
    %19 = arith.addf %17, %18 : vector<128x128xf32>
    %20 = arith.mulf %12, %19 : vector<128x128xf32>
    %21 = vector.extract_strided_slice %11 {offsets = [0, 128], sizes = [128, 128], strides = [1, 1]} : vector<128x256xf32> to vector<128x128xf32>
    %cst_12 = arith.constant 5.000000e-01 : f32
    %22 = vector.broadcast %cst_12 : f32 to vector<128x128xf32>
    %23 = arith.mulf %22, %21 : vector<128x128xf32>
    %24 = math.tanh %23 : vector<128x128xf32>
    %cst_13 = arith.constant 5.000000e-01 : f32
    %25 = vector.broadcast %cst_13 : f32 to vector<128x128xf32>
    %26 = arith.mulf %25, %24 : vector<128x128xf32>
    %cst_14 = arith.constant 5.000000e-01 : f32
    %27 = vector.broadcast %cst_14 : f32 to vector<128x128xf32>
    %28 = arith.addf %26, %27 : vector<128x128xf32>
    %29 = vector.shape_cast %20 : vector<128x128xf32> to vector<8x16x128xf32>
    %30 = vector.shape_cast %28 : vector<128x128xf32> to vector<8x16x128xf32>
    %31 = arith.mulf %30, %29 : vector<8x16x128xf32>
    %c0_15 = arith.constant 0 : index
    %c0_16 = arith.constant 0 : index
    %c0_17 = arith.constant 0 : index
    %32 = vector.load %arg9[%c0_15, %c0_16, %c0_17] : memref<8x16x128xf32, #tpu.memory_space<vmem>>, vector<8x16x128xf32>
    tpu.vector_store %arg9[%c0_15, %c0_16, %c0_17], %31 {strides = array<i32>} : memref<8x16x128xf32, #tpu.memory_space<vmem>>, vector<8x16x128xf32>,
    %cst_18 = arith.constant 1.000000e+00 : f32
    %33 = vector.broadcast %cst_18 : f32 to vector<8x16x128xf32>
    %34 = arith.subf %33, %30 : vector<8x16x128xf32>
    %c0_19 = arith.constant 0 : index
    %c0_20 = arith.constant 0 : index
    %c0_21 = arith.constant 0 : index
    %35 = vector.load %arg10[%c0_19, %c0_20, %c0_21] : memref<8x16x128xf32, #tpu.memory_space<vmem>>, vector<8x16x128xf32>
    tpu.vector_store %arg10[%c0_19, %c0_20, %c0_21], %34 {strides = array<i32>} : memref<8x16x128xf32, #tpu.memory_space<vmem>>, vector<8x16x128xf32>,
    %c0_22 = arith.constant 0 : index
    %c0_23 = arith.constant 0 : index
    %36 = vector.load %arg11[%c0_22, %c0_23] : memref<16x128xf32, #tpu.memory_space<vmem>>, vector<16x128xf32>
    %c0_i32_24 = arith.constant 0 : i32
    %37 = arith.index_cast %c0_i32_24 : i32 to index
    %c0_25 = arith.constant 0 : index
    %c0_26 = arith.constant 0 : index
    %38 = vector.load %arg9[%37, %c0_25, %c0_26] : memref<8x16x128xf32, #tpu.memory_space<vmem>>, vector<1x16x128xf32>
    %39 = vector.shape_cast %38 : vector<1x16x128xf32> to vector<16x128xf32>
    %40 = arith.index_cast %c0_i32_24 : i32 to index
    %c0_27 = arith.constant 0 : index
    %c0_28 = arith.constant 0 : index
    %41 = vector.load %arg10[%40, %c0_27, %c0_28] : memref<8x16x128xf32, #tpu.memory_space<vmem>>, vector<1x16x128xf32>
    %42 = vector.shape_cast %41 : vector<1x16x128xf32> to vector<16x128xf32>
    %43 = arith.mulf %42, %36 : vector<16x128xf32>
    %44 = arith.addf %39, %43 : vector<16x128xf32>
    %45 = arith.truncf %44 : vector<16x128xf32> to vector<16x128xbf16>
    %46 = arith.index_cast %c0_i32_24 : i32 to index
    %c0_29 = arith.constant 0 : index
    %c0_30 = arith.constant 0 : index
    %47 = vector.load %arg7[%46, %c0_29, %c0_30] : memref<8x16x128xbf16, #tpu.memory_space<vmem>>, vector<1x16x128xbf16>
    %48 = vector.shape_cast %47 : vector<1x16x128xbf16> to vector<16x128xbf16>
    %49 = vector.shape_cast %45 : vector<16x128xbf16> to vector<1x16x128xbf16>
    tpu.vector_store %arg7[%46, %c0_29, %c0_30], %49 {strides = array<i32>} : memref<8x16x128xbf16, #tpu.memory_space<vmem>>, vector<1x16x128xbf16>,
    %c1_i32 = arith.constant 1 : i32
    %50 = arith.index_cast %c1_i32 : i32 to index
    %c0_31 = arith.constant 0 : index
    %c0_32 = arith.constant 0 : index
    %51 = vector.load %arg9[%50, %c0_31, %c0_32] : memref<8x16x128xf32, #tpu.memory_space<vmem>>, vector<1x16x128xf32>
    %52 = vector.shape_cast %51 : vector<1x16x128xf32> to vector<16x128xf32>
    %53 = arith.index_cast %c1_i32 : i32 to index
    %c0_33 = arith.constant 0 : index
    %c0_34 = arith.constant 0 : index
    %54 = vector.load %arg10[%53, %c0_33, %c0_34] : memref<8x16x128xf32, #tpu.memory_space<vmem>>, vector<1x16x128xf32>
    %55 = vector.shape_cast %54 : vector<1x16x128xf32> to vector<16x128xf32>
    %56 = arith.mulf %55, %44 : vector<16x128xf32>
    %57 = arith.addf %52, %56 : vector<16x128xf32>
    %58 = arith.truncf %57 : vector<16x128xf32> to vector<16x128xbf16>
    %59 = arith.index_cast %c1_i32 : i32 to index
    %c0_35 = arith.constant 0 : index
    %c0_36 = arith.constant 0 : index
    %60 = vector.load %arg7[%59, %c0_35, %c0_36] : memref<8x16x128xbf16, #tpu.memory_space<vmem>>, vector<1x16x128xbf16>
    %61 = vector.shape_cast %60 : vector<1x16x128xbf16> to vector<16x128xbf16>
    %62 = vector.shape_cast %58 : vector<16x128xbf16> to vector<1x16x128xbf16>
    tpu.vector_store %arg7[%59, %c0_35, %c0_36], %62 {strides = array<i32>} : memref<8x16x128xbf16, #tpu.memory_space<vmem>>, vector<1x16x128xbf16>,
    %c2_i32 = arith.constant 2 : i32
    %63 = arith.index_cast %c2_i32 : i32 to index
    %c0_37 = arith.constant 0 : index
    %c0_38 = arith.constant 0 : index
    %64 = vector.load %arg9[%63, %c0_37, %c0_38] : memref<8x16x128xf32, #tpu.memory_space<vmem>>, vector<1x16x128xf32>
    %65 = vector.shape_cast %64 : vector<1x16x128xf32> to vector<16x128xf32>
    %66 = arith.index_cast %c2_i32 : i32 to index
    %c0_39 = arith.constant 0 : index
    %c0_40 = arith.constant 0 : index
    %67 = vector.load %arg10[%66, %c0_39, %c0_40] : memref<8x16x128xf32, #tpu.memory_space<vmem>>, vector<1x16x128xf32>
    %68 = vector.shape_cast %67 : vector<1x16x128xf32> to vector<16x128xf32>
    %69 = arith.mulf %68, %57 : vector<16x128xf32>
    %70 = arith.addf %65, %69 : vector<16x128xf32>
    %71 = arith.truncf %70 : vector<16x128xf32> to vector<16x128xbf16>
    %72 = arith.index_cast %c2_i32 : i32 to index
    %c0_41 = arith.constant 0 : index
    %c0_42 = arith.constant 0 : index
    %73 = vector.load %arg7[%72, %c0_41, %c0_42] : memref<8x16x128xbf16, #tpu.memory_space<vmem>>, vector<1x16x128xbf16>
    %74 = vector.shape_cast %73 : vector<1x16x128xbf16> to vector<16x128xbf16>
    %75 = vector.shape_cast %71 : vector<16x128xbf16> to vector<1x16x128xbf16>
    tpu.vector_store %arg7[%72, %c0_41, %c0_42], %75 {strides = array<i32>} : memref<8x16x128xbf16, #tpu.memory_space<vmem>>, vector<1x16x128xbf16>,
    %c3_i32 = arith.constant 3 : i32
    %76 = arith.index_cast %c3_i32 : i32 to index
    %c0_43 = arith.constant 0 : index
    %c0_44 = arith.constant 0 : index
    %77 = vector.load %arg9[%76, %c0_43, %c0_44] : memref<8x16x128xf32, #tpu.memory_space<vmem>>, vector<1x16x128xf32>
    %78 = vector.shape_cast %77 : vector<1x16x128xf32> to vector<16x128xf32>
    %79 = arith.index_cast %c3_i32 : i32 to index
    %c0_45 = arith.constant 0 : index
    %c0_46 = arith.constant 0 : index
    %80 = vector.load %arg10[%79, %c0_45, %c0_46] : memref<8x16x128xf32, #tpu.memory_space<vmem>>, vector<1x16x128xf32>
    %81 = vector.shape_cast %80 : vector<1x16x128xf32> to vector<16x128xf32>
    %82 = arith.mulf %81, %70 : vector<16x128xf32>
    %83 = arith.addf %78, %82 : vector<16x128xf32>
    %84 = arith.truncf %83 : vector<16x128xf32> to vector<16x128xbf16>
    %85 = arith.index_cast %c3_i32 : i32 to index
    %c0_47 = arith.constant 0 : index
    %c0_48 = arith.constant 0 : index
    %86 = vector.load %arg7[%85, %c0_47, %c0_48] : memref<8x16x128xbf16, #tpu.memory_space<vmem>>, vector<1x16x128xbf16>
    %87 = vector.shape_cast %86 : vector<1x16x128xbf16> to vector<16x128xbf16>
    %88 = vector.shape_cast %84 : vector<16x128xbf16> to vector<1x16x128xbf16>
    tpu.vector_store %arg7[%85, %c0_47, %c0_48], %88 {strides = array<i32>} : memref<8x16x128xbf16, #tpu.memory_space<vmem>>, vector<1x16x128xbf16>,
    %c4_i32 = arith.constant 4 : i32
    %89 = arith.index_cast %c4_i32 : i32 to index
    %c0_49 = arith.constant 0 : index
    %c0_50 = arith.constant 0 : index
    %90 = vector.load %arg9[%89, %c0_49, %c0_50] : memref<8x16x128xf32, #tpu.memory_space<vmem>>, vector<1x16x128xf32>
    %91 = vector.shape_cast %90 : vector<1x16x128xf32> to vector<16x128xf32>
    %92 = arith.index_cast %c4_i32 : i32 to index
    %c0_51 = arith.constant 0 : index
    %c0_52 = arith.constant 0 : index
    %93 = vector.load %arg10[%92, %c0_51, %c0_52] : memref<8x16x128xf32, #tpu.memory_space<vmem>>, vector<1x16x128xf32>
    %94 = vector.shape_cast %93 : vector<1x16x128xf32> to vector<16x128xf32>
    %95 = arith.mulf %94, %83 : vector<16x128xf32>
    %96 = arith.addf %91, %95 : vector<16x128xf32>
    %97 = arith.truncf %96 : vector<16x128xf32> to vector<16x128xbf16>
    %98 = arith.index_cast %c4_i32 : i32 to index
    %c0_53 = arith.constant 0 : index
    %c0_54 = arith.constant 0 : index
    %99 = vector.load %arg7[%98, %c0_53, %c0_54] : memref<8x16x128xbf16, #tpu.memory_space<vmem>>, vector<1x16x128xbf16>
    %100 = vector.shape_cast %99 : vector<1x16x128xbf16> to vector<16x128xbf16>
    %101 = vector.shape_cast %97 : vector<16x128xbf16> to vector<1x16x128xbf16>
    tpu.vector_store %arg7[%98, %c0_53, %c0_54], %101 {strides = array<i32>} : memref<8x16x128xbf16, #tpu.memory_space<vmem>>, vector<1x16x128xbf16>,
    %c5_i32 = arith.constant 5 : i32
    %102 = arith.index_cast %c5_i32 : i32 to index
    %c0_55 = arith.constant 0 : index
    %c0_56 = arith.constant 0 : index
    %103 = vector.load %arg9[%102, %c0_55, %c0_56] : memref<8x16x128xf32, #tpu.memory_space<vmem>>, vector<1x16x128xf32>
    %104 = vector.shape_cast %103 : vector<1x16x128xf32> to vector<16x128xf32>
    %105 = arith.index_cast %c5_i32 : i32 to index
    %c0_57 = arith.constant 0 : index
    %c0_58 = arith.constant 0 : index
    %106 = vector.load %arg10[%105, %c0_57, %c0_58] : memref<8x16x128xf32, #tpu.memory_space<vmem>>, vector<1x16x128xf32>
    %107 = vector.shape_cast %106 : vector<1x16x128xf32> to vector<16x128xf32>
    %108 = arith.mulf %107, %96 : vector<16x128xf32>
    %109 = arith.addf %104, %108 : vector<16x128xf32>
    %110 = arith.truncf %109 : vector<16x128xf32> to vector<16x128xbf16>
    %111 = arith.index_cast %c5_i32 : i32 to index
    %c0_59 = arith.constant 0 : index
    %c0_60 = arith.constant 0 : index
    %112 = vector.load %arg7[%111, %c0_59, %c0_60] : memref<8x16x128xbf16, #tpu.memory_space<vmem>>, vector<1x16x128xbf16>
    %113 = vector.shape_cast %112 : vector<1x16x128xbf16> to vector<16x128xbf16>
    %114 = vector.shape_cast %110 : vector<16x128xbf16> to vector<1x16x128xbf16>
    tpu.vector_store %arg7[%111, %c0_59, %c0_60], %114 {strides = array<i32>} : memref<8x16x128xbf16, #tpu.memory_space<vmem>>, vector<1x16x128xbf16>,
    %c6_i32 = arith.constant 6 : i32
    %115 = arith.index_cast %c6_i32 : i32 to index
    %c0_61 = arith.constant 0 : index
    %c0_62 = arith.constant 0 : index
    %116 = vector.load %arg9[%115, %c0_61, %c0_62] : memref<8x16x128xf32, #tpu.memory_space<vmem>>, vector<1x16x128xf32>
    %117 = vector.shape_cast %116 : vector<1x16x128xf32> to vector<16x128xf32>
    %118 = arith.index_cast %c6_i32 : i32 to index
    %c0_63 = arith.constant 0 : index
    %c0_64 = arith.constant 0 : index
    %119 = vector.load %arg10[%118, %c0_63, %c0_64] : memref<8x16x128xf32, #tpu.memory_space<vmem>>, vector<1x16x128xf32>
    %120 = vector.shape_cast %119 : vector<1x16x128xf32> to vector<16x128xf32>
    %121 = arith.mulf %120, %109 : vector<16x128xf32>
    %122 = arith.addf %117, %121 : vector<16x128xf32>
    %123 = arith.truncf %122 : vector<16x128xf32> to vector<16x128xbf16>
    %124 = arith.index_cast %c6_i32 : i32 to index
    %c0_65 = arith.constant 0 : index
    %c0_66 = arith.constant 0 : index
    %125 = vector.load %arg7[%124, %c0_65, %c0_66] : memref<8x16x128xbf16, #tpu.memory_space<vmem>>, vector<1x16x128xbf16>
    %126 = vector.shape_cast %125 : vector<1x16x128xbf16> to vector<16x128xbf16>
    %127 = vector.shape_cast %123 : vector<16x128xbf16> to vector<1x16x128xbf16>
    tpu.vector_store %arg7[%124, %c0_65, %c0_66], %127 {strides = array<i32>} : memref<8x16x128xbf16, #tpu.memory_space<vmem>>, vector<1x16x128xbf16>,
    %c7_i32 = arith.constant 7 : i32
    %128 = arith.index_cast %c7_i32 : i32 to index
    %c0_67 = arith.constant 0 : index
    %c0_68 = arith.constant 0 : index
    %129 = vector.load %arg9[%128, %c0_67, %c0_68] : memref<8x16x128xf32, #tpu.memory_space<vmem>>, vector<1x16x128xf32>
    %130 = vector.shape_cast %129 : vector<1x16x128xf32> to vector<16x128xf32>
    %131 = arith.index_cast %c7_i32 : i32 to index
    %c0_69 = arith.constant 0 : index
    %c0_70 = arith.constant 0 : index
    %132 = vector.load %arg10[%131, %c0_69, %c0_70] : memref<8x16x128xf32, #tpu.memory_space<vmem>>, vector<1x16x128xf32>
    %133 = vector.shape_cast %132 : vector<1x16x128xf32> to vector<16x128xf32>
    %134 = arith.mulf %133, %122 : vector<16x128xf32>
    %135 = arith.addf %130, %134 : vector<16x128xf32>
    %136 = arith.truncf %135 : vector<16x128xf32> to vector<16x128xbf16>
    %137 = arith.index_cast %c7_i32 : i32 to index
    %c0_71 = arith.constant 0 : index
    %c0_72 = arith.constant 0 : index
    %138 = vector.load %arg7[%137, %c0_71, %c0_72] : memref<8x16x128xbf16, #tpu.memory_space<vmem>>, vector<1x16x128xbf16>
    %139 = vector.shape_cast %138 : vector<1x16x128xbf16> to vector<16x128xbf16>
    %140 = vector.shape_cast %136 : vector<16x128xbf16> to vector<1x16x128xbf16>
    tpu.vector_store %arg7[%137, %c0_71, %c0_72], %140 {strides = array<i32>} : memref<8x16x128xbf16, #tpu.memory_space<vmem>>, vector<1x16x128xbf16>,
    %c8_i32 = arith.constant 8 : i32
    %c0_73 = arith.constant 0 : index
    %c0_74 = arith.constant 0 : index
    %141 = vector.load %arg11[%c0_73, %c0_74] : memref<16x128xf32, #tpu.memory_space<vmem>>, vector<16x128xf32>
    tpu.vector_store %arg11[%c0_73, %c0_74], %135 {strides = array<i32>} : memref<16x128xf32, #tpu.memory_space<vmem>>, vector<16x128xf32>,
    %c0_i32_75 = arith.constant 0 : i32
    %142 = arith.cmpi eq, %arg2, %c0_i32_75 : i32
    %143 = arith.extui %142 : i1 to i32
    %c0_i32_76 = arith.constant 0 : i32
    %144 = arith.cmpi ne, %143, %c0_i32_76 : i32
    scf.if %144 {
      %c0_77 = arith.constant 0 : index
      %c0_78 = arith.constant 0 : index
      %145 = vector.load %arg11[%c0_77, %c0_78] : memref<16x128xf32, #tpu.memory_space<vmem>>, vector<16x128xf32>
      %c0_79 = arith.constant 0 : index
      %c0_80 = arith.constant 0 : index
      %146 = vector.load %arg8[%c0_79, %c0_80] : memref<16x128xf32, #tpu.memory_space<vmem>>, vector<16x128xf32>
      tpu.vector_store %arg8[%c0_79, %c0_80], %145 {strides = array<i32>} : memref<16x128xf32, #tpu.memory_space<vmem>>, vector<16x128xf32>,
    } else {
    }
    return
  }
  func.func @transform_0(%arg0: i32, %arg1: i32, %arg2: i32) -> (i32, i32, i32) {
    %c0_i32 = arith.constant 0 : i32
    %c0_i32_0 = arith.constant 0 : i32
    return %arg2, %arg0, %c0_i32 : i32, i32, i32
  }
  func.func @transform_1(%arg0: i32, %arg1: i32, %arg2: i32) -> (i32, i32, i32) {
    %c0_i32 = arith.constant 0 : i32
    %c0_i32_0 = arith.constant 0 : i32
    %c0_i32_1 = arith.constant 0 : i32
    return %arg1, %c0_i32, %c0_i32_0 : i32, i32, i32
  }
  func.func @transform_2(%arg0: i32, %arg1: i32, %arg2: i32) -> (i32, i32, i32) {
    %c0_i32 = arith.constant 0 : i32
    %c0_i32_0 = arith.constant 0 : i32
    %c0_i32_1 = arith.constant 0 : i32
    return %arg1, %c0_i32, %c0_i32_0 : i32, i32, i32
  }
  func.func @transform_3(%arg0: i32, %arg1: i32, %arg2: i32) -> (i32, i32) {
    %c0_i32 = arith.constant 0 : i32
    return %arg0, %arg1 : i32, i32
  }
  func.func @transform_4(%arg0: i32, %arg1: i32, %arg2: i32) -> (i32, i32, i32) {
    %c0_i32 = arith.constant 0 : i32
    return %arg2, %arg0, %arg1 : i32, i32, i32
  }
  func.func @transform_5(%arg0: i32, %arg1: i32, %arg2: i32) -> (i32, i32) {
    %c0_i32 = arith.constant 0 : i32
    return %arg0, %arg1 : i32, i32
  }
}

</mosaic_0001>

<llo_original>
// kernel: tpu_custom_call.1
$region0: #{tpu_custom_call.1}
  #allocation0 [shape = 'u32[]', space=smem, size = 0x4, offset = 0x4, fixed_abs, tag = 'smem constant byte address 0x4 - core index']
  #allocation1 [shape = 'u32[144,128]{1,0:T(1,128)}', space=vmem, size = 0x12000, scoped, tag = 'internal scratch']
  #allocation2 [shape = 'f32[8,16,128]{2,1,0:T(8,128)}', space=vmem, size = 0x10000, scoped, tag = 'scratch operand']
  #allocation3 [shape = 'f32[8,16,128]{2,1,0:T(8,128)}', space=vmem, size = 0x10000, scoped, tag = 'scratch operand']
  #allocation4 [shape = 'f32[16,128]{1,0:T(8,128)}', space=vmem, size = 0x2000, scoped, tag = 'scratch operand']
  %s0 = inlined_call_operand.hbm [shape: bf16[8,16,128], index: 0, kind: input, shape index: {}]
  %s1 = inlined_call_operand.hbm [shape: bf16[1,128,256], index: 1, kind: input, shape index: {}]
  %s2 = inlined_call_operand.hbm [shape: f32[1,1,256], index: 2, kind: input, shape index: {}]
  %s3 = inlined_call_operand.hbm [shape: f32[16,128], index: 3, kind: input, shape index: {}]
  %s4 = inlined_call_operand.hbm [shape: bf16[8,16,128], index: 4, kind: output, shape index: {0}]
  %s5 = inlined_call_operand.hbm [shape: f32[16,128], index: 5, kind: output, shape index: {1}]
  %6 = xla_tuple %s4, %s5
  %s7 = sld [smem:[#allocation0]]
  $region58: #{tpu_custom_call.1} parent=0
    _
  %s9 = ssub.s32 1, %s7
  %s10 = scalar_select 0, %s9, %s7
  $region1: #{tpu_custom_call.1} parent=0
    #allocation5 [shape = 'u8[32768]{0}', space=vmem, size = 0x8000, scoped, tag = 'input window, operand 0, single buffered']
    #allocation6 [shape = 's32[1]{0}', space=sflag, size = 0x4, scoped, tag = 'scoped memory for tpu_custom_call.1']
    #allocation7 [shape = 's32[1]{0}', space=sflag, size = 0x4, scoped, tag = 'scoped memory for tpu_custom_call.1']
    #allocation8 [shape = 'u8[65536]{0}', space=vmem, size = 0x10000, scoped, tag = 'input window, operand 1, single buffered']
    #allocation9 [shape = 's32[1]{0}', space=sflag, size = 0x4, scoped, tag = 'scoped memory for tpu_custom_call.1']
    #allocation10 [shape = 'u8[1024]{0}', space=vmem, size = 0x400, scoped, tag = 'input window, operand 2, single buffered']
    #allocation11 [shape = 'u8[8192]{0}', space=vmem, size = 0x2000, scoped, tag = 'input window, operand 3, single buffered']
    #allocation12 [shape = 's32[1]{0}', space=sflag, size = 0x4, scoped, tag = 'scoped memory for tpu_custom_call.1']
    #allocation13 [shape = 'u8[32768]{0}', space=vmem, size = 0x8000, scoped, tag = 'output window, operand 0, single buffered']
    #allocation14 [shape = 'u8[8192]{0}', space=vmem, size = 0x2000, scoped, tag = 'output window, operand 1, single buffered']
    #allocation15 [shape = 's32[1]{0}', space=sflag, size = 0x4, scoped, tag = 'scoped memory for tpu_custom_call.1']
    %11 = vsyncpa [#allocation6], 0
    %12 = vsyncpa [#allocation9], 0
    %13 = vsyncpa [#allocation12], 0
    %14 = vsyncpa [#allocation7], 0
    %15 = vsyncpa [#allocation15], 0
    // Predicated region
    $region2: #{tpu_custom_call.1} parent=1 // pred_check
      _
    $region3: #{tpu_custom_call.1} parent=1 // pred_check_branch
      %17 = sbr.rel (0) target = $region5
    $region4: #{tpu_custom_call.1} parent=1 // pred_region
      %s19 = ssub.s32 1024, 1024
      %20 = vsyncadd [#allocation6], %s19
      %s21 = sshll.u32 [#allocation5], 4
      %s22 = int_to_ptr.vmem [resolvable:$true] %s21
      %27 = dma.hbm_to_vmem [thread:$0]  %s0, 1024, %s22, [#allocation6], 64, 64, 4
    $region5: #{tpu_custom_call.1} parent=1 // pred_fallthru
      _
    // Predicated region
    $region6: #{tpu_custom_call.1} parent=1 // pred_check
      _
    $region7: #{tpu_custom_call.1} parent=1 // pred_check_branch
      %29 = sbr.rel (0) target = $region9
    $region8: #{tpu_custom_call.1} parent=1 // pred_region
      %s31 = ssub.s32 2048, 2048
      %32 = vsyncadd [#allocation9], %s31
      %s33 = sshll.u32 [#allocation8], 4
      %s34 = int_to_ptr.vmem [resolvable:$true] %s33
      %39 = dma.hbm_to_vmem [thread:$0]  %s1, 2048, %s34, [#allocation9], 128, 128, 8
    $region9: #{tpu_custom_call.1} parent=1 // pred_fallthru
      _
    // Predicated region
    $region10: #{tpu_custom_call.1} parent=1 // pred_check
      _
    $region11: #{tpu_custom_call.1} parent=1 // pred_check_branch
      %41 = sbr.rel (0) target = $region13
    $region12: #{tpu_custom_call.1} parent=1 // pred_region
      %s43 = ssub.s32 32, 32
      %44 = vsyncadd [#allocation9], %s43
      %s46 = sshll.u32 [#allocation10], 4
      %s47 = int_to_ptr.vmem [resolvable:$true] %s46
      %49 = dma.hbm_to_vmem [thread:$0]  %s2, 32, %s47, [#allocation9]
    $region13: #{tpu_custom_call.1} parent=1 // pred_fallthru
      _
    // Predicated region
    $region14: #{tpu_custom_call.1} parent=1 // pred_check
      _
    $region15: #{tpu_custom_call.1} parent=1 // pred_check_branch
      %51 = sbr.rel (0) target = $region17
    $region16: #{tpu_custom_call.1} parent=1 // pred_region
      %s53 = ssub.s32 256, 256
      %54 = vsyncadd [#allocation12], %s53
      %s55 = sshll.u32 [#allocation11], 4
      %s56 = int_to_ptr.vmem [resolvable:$true] %s55
      %61 = dma.hbm_to_vmem [thread:$0]  %s3, 256, %s56, [#allocation12], 128, 128, 8
    $region17: #{tpu_custom_call.1} parent=1 // pred_fallthru
      _
    // Predicated region
    $region18: #{tpu_custom_call.1} parent=1 // pred_check
      _
    $region19: #{tpu_custom_call.1} parent=1 // pred_check_branch
      %63 = sbr.rel (0) target = $region21
    $region20: #{tpu_custom_call.1} parent=1 // pred_region
      %64 = dma.done [#allocation6], 1024
    $region21: #{tpu_custom_call.1} parent=1 // pred_fallthru
      _
    // Predicated region
    $region22: #{tpu_custom_call.1} parent=1 // pred_check
      _
    $region23: #{tpu_custom_call.1} parent=1 // pred_check_branch
      %66 = sbr.rel (0) target = $region25
    $region24: #{tpu_custom_call.1} parent=1 // pred_region
      %67 = dma.done [#allocation9], 2048
    $region25: #{tpu_custom_call.1} parent=1 // pred_fallthru
      _
    // Predicated region
    $region26: #{tpu_custom_call.1} parent=1 // pred_check
      _
    $region27: #{tpu_custom_call.1} parent=1 // pred_check_branch
      %69 = sbr.rel (0) target = $region29
    $region28: #{tpu_custom_call.1} parent=1 // pred_region
      %70 = dma.done [#allocation9], 32
    $region29: #{tpu_custom_call.1} parent=1 // pred_fallthru
      _
    // Predicated region
    $region30: #{tpu_custom_call.1} parent=1 // pred_check
      _
    $region31: #{tpu_custom_call.1} parent=1 // pred_check_branch
      %72 = sbr.rel (0) target = $region33
    $region32: #{tpu_custom_call.1} parent=1 // pred_region
      %73 = dma.done [#allocation12], 256
    $region33: #{tpu_custom_call.1} parent=1 // pred_fallthru
      _
    %p75 = scmp.eq.s32.totalorder 0, 0
    // Predicated region
    $region34: #{tpu_custom_call.1} parent=1 // pred_check
      %p76 = pneg %p75
    $region35: #{tpu_custom_call.1} parent=1 // pred_check_branch
      %78 = sbr.rel (%p76) target = $region37
    $region36: #{tpu_custom_call.1} parent=1 // pred_region
      %v79 = vld [vmem:[#allocation11] sm:$0xff]
      %v80 = vld [vmem:[#allocation11 + $0x8] sm:$0xff]
      %81 = vst [vmem:[#allocation4] sm:$0xff] %v79
      %82 = vst [vmem:[#allocation4 + $0x8] sm:$0xff] %v80
    $region37: #{tpu_custom_call.1} parent=1 // pred_fallthru
      _
    %v83 = vld [vmem:[#allocation5] sm:$0xf]
    %v84 = vld [vmem:[#allocation5 + $0x4] sm:$0xf]
    %v85 = vld [vmem:[#allocation5 + $0x8] sm:$0xf]
    %v86 = vld [vmem:[#allocation5 + $0xc] sm:$0xf]
    %v87 = vld [vmem:[#allocation5 + $0x10] sm:$0xf]
    %v88 = vld [vmem:[#allocation5 + $0x14] sm:$0xf]
    %v89 = vld [vmem:[#allocation5 + $0x18] sm:$0xf]
    %v90 = vld [vmem:[#allocation5 + $0x1c] sm:$0xf]
    %v91 = vld [vmem:[#allocation5 + $0x20] sm:$0xf]
    %v92 = vld [vmem:[#allocation5 + $0x24] sm:$0xf]
    %v93 = vld [vmem:[#allocation5 + $0x28] sm:$0xf]
    %v94 = vld [vmem:[#allocation5 + $0x2c] sm:$0xf]
    %v95 = vld [vmem:[#allocation5 + $0x30] sm:$0xf]
    %v96 = vld [vmem:[#allocation5 + $0x34] sm:$0xf]
    %v97 = vld [vmem:[#allocation5 + $0x38] sm:$0xf]
    %v98 = vld [vmem:[#allocation5 + $0x3c] sm:$0xf]
    %v99 = vld [vmem:[#allocation8] sm:$0xff]
    %v100 = vld [vmem:[#allocation8 + $0x8] sm:$0xff]
    %v101 = vld [vmem:[#allocation8 + $0x10] sm:$0xff]
    %v102 = vld [vmem:[#allocation8 + $0x18] sm:$0xff]
    %v103 = vld [vmem:[#allocation8 + $0x20] sm:$0xff]
    %v104 = vld [vmem:[#allocation8 + $0x28] sm:$0xff]
    %v105 = vld [vmem:[#allocation8 + $0x30] sm:$0xff]
    %v106 = vld [vmem:[#allocation8 + $0x38] sm:$0xff]
    %v107 = vld [vmem:[#allocation8 + $0x40] sm:$0xff]
    %v108 = vld [vmem:[#allocation8 + $0x48] sm:$0xff]
    %v109 = vld [vmem:[#allocation8 + $0x50] sm:$0xff]
    %v110 = vld [vmem:[#allocation8 + $0x58] sm:$0xff]
    %v111 = vld [vmem:[#allocation8 + $0x60] sm:$0xff]
    %v112 = vld [vmem:[#allocation8 + $0x68] sm:$0xff]
    %v113 = vld [vmem:[#allocation8 + $0x70] sm:$0xff]
    %v114 = vld [vmem:[#allocation8 + $0x78] sm:$0xff]
    %v115 = vld [vmem:[#allocation10] sm:$0x3]
    %v117 = vlaneseq
    %v118 = vshrl.u32 %v117, 7
    %v119 = vsub.s32 0, %v118
    %v120 = vrot.slane %v115, %v119
    %v121 = vlaneseq
    %v122 = vshrl.u32 %v121, 7
    %v123 = vsub.s32 1, %v122
    %v124 = vrot.slane %v115, %v123
    %v143 = vunpack.c.l.b16 %v83
    %v144 = vunpack.c.l.b16 %v84
    %v145 = vunpack.c.l.b16 %v85
    %v146 = vunpack.c.l.b16 %v86
    %v147 = vunpack.c.l.b16 %v87
    %v148 = vunpack.c.l.b16 %v88
    %v149 = vunpack.c.l.b16 %v89
    %v150 = vunpack.c.l.b16 %v90
    %v151 = vunpack.c.l.b16 %v91
    %v152 = vunpack.c.l.b16 %v92
    %v153 = vunpack.c.l.b16 %v93
    %v154 = vunpack.c.l.b16 %v94
    %v155 = vunpack.c.l.b16 %v95
    %v156 = vunpack.c.l.b16 %v96
    %v157 = vunpack.c.l.b16 %v97
    %v158 = vunpack.c.l.b16 %v98
    %v159 = vpack.c.b16 %v144, %v143
    %v160 = vpack.c.b16 %v146, %v145
    %v161 = vpack.c.b16 %v148, %v147
    %v162 = vpack.c.b16 %v150, %v149
    %v163 = vpack.c.b16 %v152, %v151
    %v164 = vpack.c.b16 %v154, %v153
    %v165 = vpack.c.b16 %v156, %v155
    %v166 = vpack.c.b16 %v158, %v157
    %v191 = vunpack.c.l.b16 %v99
    %v192 = vunpack.c.h.b16 %v99
    %v193 = vunpack.c.l.b16 %v100
    %v194 = vunpack.c.h.b16 %v100
    %v195 = vunpack.c.l.b16 %v101
    %v196 = vunpack.c.h.b16 %v101
    %v197 = vunpack.c.l.b16 %v102
    %v198 = vunpack.c.h.b16 %v102
    %v199 = vunpack.c.l.b16 %v103
    %v200 = vunpack.c.h.b16 %v103
    %v201 = vunpack.c.l.b16 %v104
    %v202 = vunpack.c.h.b16 %v104
    %v203 = vunpack.c.l.b16 %v105
    %v204 = vunpack.c.h.b16 %v105
    %v205 = vunpack.c.l.b16 %v106
    %v206 = vunpack.c.h.b16 %v106
    %v207 = vunpack.c.l.b16 %v107
    %v208 = vunpack.c.h.b16 %v107
    %v209 = vunpack.c.l.b16 %v108
    %v210 = vunpack.c.h.b16 %v108
    %v211 = vunpack.c.l.b16 %v109
    %v212 = vunpack.c.h.b16 %v109
    %v213 = vunpack.c.l.b16 %v110
    %v214 = vunpack.c.h.b16 %v110
    %v215 = vunpack.c.l.b16 %v111
    %v216 = vunpack.c.h.b16 %v111
    %v217 = vunpack.c.l.b16 %v112
    %v218 = vunpack.c.h.b16 %v112
    %v219 = vunpack.c.l.b16 %v113
    %v220 = vunpack.c.h.b16 %v113
    %v221 = vunpack.c.l.b16 %v114
    %v222 = vunpack.c.h.b16 %v114
    %v223 = vpack.c.b16 %v193, %v191
    %v224 = vpack.c.b16 %v194, %v192
    %v225 = vpack.c.b16 %v197, %v195
    %v226 = vpack.c.b16 %v198, %v196
    %v227 = vpack.c.b16 %v201, %v199
    %v228 = vpack.c.b16 %v202, %v200
    %v229 = vpack.c.b16 %v205, %v203
    %v230 = vpack.c.b16 %v206, %v204
    %v231 = vpack.c.b16 %v209, %v207
    %v232 = vpack.c.b16 %v210, %v208
    %v233 = vpack.c.b16 %v213, %v211
    %v234 = vpack.c.b16 %v214, %v212
    %v235 = vpack.c.b16 %v217, %v215
    %v236 = vpack.c.b16 %v218, %v216
    %v237 = vpack.c.b16 %v221, %v219
    %v238 = vpack.c.b16 %v222, %v220
    %255 = vmatprep.subr.bf16.mxu0 %v224
    %256 = vmatpush1.bf16.msra.mxu0 %v223
    %257 = vmatprep.subr.bf16.mxu0 %v226
    %258 = vmatpush1.bf16.msra.mxu0 %v225
    %259 = vmatprep.subr.bf16.mxu0 %v228
    %260 = vmatpush1.bf16.msra.mxu0 %v227
    %261 = vmatprep.subr.bf16.mxu0 %v230
    %262 = vmatpush1.bf16.msra.mxu0 %v229
    %263 = vmatprep.subr.bf16.mxu0 %v232
    %264 = vmatpush1.bf16.msra.mxu0 %v231
    %265 = vmatprep.subr.bf16.mxu0 %v234
    %266 = vmatpush1.bf16.msra.mxu0 %v233
    %267 = vmatprep.subr.bf16.mxu0 %v236
    %268 = vmatpush1.bf16.msra.mxu0 %v235
    %269 = vmatprep.subr.bf16.mxu0 %v238
    %270 = vmatpush1.bf16.msra.mxu0 %v237
    %271 = vmatprep.subr.bf16.mxu0 0
    %272 = vmatpush1.bf16.msra.mxu0 0
    %273 = vmatprep.subr.bf16.mxu0 0
    %274 = vmatpush1.bf16.msra.mxu0 0
    %275 = vmatprep.subr.bf16.mxu0 0
    %276 = vmatpush1.bf16.msra.mxu0 0
    %277 = vmatprep.subr.bf16.mxu0 0
    %278 = vmatpush1.bf16.msra.mxu0 0
    %279 = vmatprep.subr.bf16.mxu0 0
    %280 = vmatpush1.bf16.msra.mxu0 0
    %281 = vmatprep.subr.bf16.mxu0 0
    %282 = vmatpush1.bf16.msra.mxu0 0
    %283 = vmatprep.subr.bf16.mxu0 0
    %284 = vmatpush1.bf16.msra.mxu0 0
    %285 = vmatprep.subr.bf16.mxu0 0
    %286 = vmatpush1.bf16.msra.mxu0 0
    %287 = vmatprep.mubr.bf16.mxu0 0
    %288 = vmatmul.mubr.bf16.gmra.mrb[0].mxu0 %v159
    %v289 = vpop.f32.mrb[0].mxu0
    %v290 = vadd.f32 %v120, %v289
    %v291 = vpop.f32.mrb[0].mxu0
    %v292 = vadd.f32 %v124, %v291
    %v293 = vpop.f32.mrb[0].mxu0
    %v294 = vadd.f32 %v120, %v293
    %v295 = vpop.f32.mrb[0].mxu0
    %v296 = vadd.f32 %v124, %v295
    %297 = vmatprep.mubr.bf16.mxu0 0
    %298 = vmatmul.mubr.bf16.gmra.mrb[0].mxu0 %v160
    %v299 = vpop.f32.mrb[0].mxu0
    %v300 = vadd.f32 %v120, %v299
    %v301 = vpop.f32.mrb[0].mxu0
    %v302 = vadd.f32 %v124, %v301
    %v303 = vpop.f32.mrb[0].mxu0
    %v304 = vadd.f32 %v120, %v303
    %v305 = vpop.f32.mrb[0].mxu0
    %v306 = vadd.f32 %v124, %v305
    %307 = vmatprep.mubr.bf16.mxu0 0
    %308 = vmatmul.mubr.bf16.gmra.mrb[0].mxu0 %v161
    %v309 = vpop.f32.mrb[0].mxu0
    %v310 = vadd.f32 %v120, %v309
    %v311 = vpop.f32.mrb[0].mxu0
    %v312 = vadd.f32 %v124, %v311
    %v313 = vpop.f32.mrb[0].mxu0
    %v314 = vadd.f32 %v120, %v313
    %v315 = vpop.f32.mrb[0].mxu0
    %v316 = vadd.f32 %v124, %v315
    %317 = vmatprep.mubr.bf16.mxu0 0
    %318 = vmatmul.mubr.bf16.gmra.mrb[0].mxu0 %v162
    %v319 = vpop.f32.mrb[0].mxu0
    %v320 = vadd.f32 %v120, %v319
    %v321 = vpop.f32.mrb[0].mxu0
    %v322 = vadd.f32 %v124, %v321
    %v323 = vpop.f32.mrb[0].mxu0
    %v324 = vadd.f32 %v120, %v323
    %v325 = vpop.f32.mrb[0].mxu0
    %v326 = vadd.f32 %v124, %v325
    %327 = vmatprep.mubr.bf16.mxu0 0
    %328 = vmatmul.mubr.bf16.gmra.mrb[0].mxu0 %v163
    %v329 = vpop.f32.mrb[0].mxu0
    %v330 = vadd.f32 %v120, %v329
    %v331 = vpop.f32.mrb[0].mxu0
    %v332 = vadd.f32 %v124, %v331
    %v333 = vpop.f32.mrb[0].mxu0
    %v334 = vadd.f32 %v120, %v333
    %v335 = vpop.f32.mrb[0].mxu0
    %v336 = vadd.f32 %v124, %v335
    %337 = vmatprep.mubr.bf16.mxu0 0
    %338 = vmatmul.mubr.bf16.gmra.mrb[0].mxu0 %v164
    %v339 = vpop.f32.mrb[0].mxu0
    %v340 = vadd.f32 %v120, %v339
    %v341 = vpop.f32.mrb[0].mxu0
    %v342 = vadd.f32 %v124, %v341
    %v343 = vpop.f32.mrb[0].mxu0
    %v344 = vadd.f32 %v120, %v343
    %v345 = vpop.f32.mrb[0].mxu0
    %v346 = vadd.f32 %v124, %v345
    %347 = vmatprep.mubr.bf16.mxu0 0
    %348 = vmatmul.mubr.bf16.gmra.mrb[0].mxu0 %v165
    %v349 = vpop.f32.mrb[0].mxu0
    %v350 = vadd.f32 %v120, %v349
    %v351 = vpop.f32.mrb[0].mxu0
    %v352 = vadd.f32 %v124, %v351
    %v353 = vpop.f32.mrb[0].mxu0
    %v354 = vadd.f32 %v120, %v353
    %v355 = vpop.f32.mrb[0].mxu0
    %v356 = vadd.f32 %v124, %v355
    %357 = vmatprep.mubr.bf16.mxu0 0
    %358 = vmatmul.mubr.bf16.gmra.mrb[0].mxu0 %v166
    %v359 = vpop.f32.mrb[0].mxu0
    %v360 = vadd.f32 %v120, %v359
    %v361 = vpop.f32.mrb[0].mxu0
    %v362 = vadd.f32 %v124, %v361
    %v363 = vpop.f32.mrb[0].mxu0
    %v364 = vadd.f32 %v120, %v363
    %v365 = vpop.f32.mrb[0].mxu0
    %v366 = vadd.f32 %v124, %v365
    %367 = vdwg.mxu0
    %v368 = vmul.f32 %v290, 0.851
    %v369 = vmul.f32 %v294, 0.851
    %v370 = vmul.f32 %v300, 0.851
    %v371 = vmul.f32 %v304, 0.851
    %v372 = vmul.f32 %v310, 0.851
    %v373 = vmul.f32 %v314, 0.851
    %v374 = vmul.f32 %v320, 0.851
    %v375 = vmul.f32 %v324, 0.851
    %v376 = vmul.f32 %v330, 0.851
    %v377 = vmul.f32 %v334, 0.851
    %v378 = vmul.f32 %v340, 0.851
    %v379 = vmul.f32 %v344, 0.851
    %v380 = vmul.f32 %v350, 0.851
    %v381 = vmul.f32 %v354, 0.851
    %v382 = vmul.f32 %v360, 0.851
    %v383 = vmul.f32 %v364, 0.851
    %v384 = vtanh.pop %v368
    %v385 = vtanh.pop %v369
    %v386 = vtanh.pop %v370
    %v387 = vtanh.pop %v371
    %v388 = vtanh.pop %v372
    %v389 = vtanh.pop %v373
    %v390 = vtanh.pop %v374
    %v391 = vtanh.pop %v375
    %v392 = vtanh.pop %v376
    %v393 = vtanh.pop %v377
    %v394 = vtanh.pop %v378
    %v395 = vtanh.pop %v379
    %v396 = vtanh.pop %v380
    %v397 = vtanh.pop %v381
    %v398 = vtanh.pop %v382
    %v399 = vtanh.pop %v383
    %v400 = vmul.f32 %v384, 0.5
    %v401 = vmul.f32 %v385, 0.5
    %v402 = vmul.f32 %v386, 0.5
    %v403 = vmul.f32 %v387, 0.5
    %v404 = vmul.f32 %v388, 0.5
    %v405 = vmul.f32 %v389, 0.5
    %v406 = vmul.f32 %v390, 0.5
    %v407 = vmul.f32 %v391, 0.5
    %v408 = vmul.f32 %v392, 0.5
    %v409 = vmul.f32 %v393, 0.5
    %v410 = vmul.f32 %v394, 0.5
    %v411 = vmul.f32 %v395, 0.5
    %v412 = vmul.f32 %v396, 0.5
    %v413 = vmul.f32 %v397, 0.5
    %v414 = vmul.f32 %v398, 0.5
    %v415 = vmul.f32 %v399, 0.5
    %v416 = vadd.f32 %v400, 0.5
    %v417 = vadd.f32 %v401, 0.5
    %v418 = vadd.f32 %v402, 0.5
    %v419 = vadd.f32 %v403, 0.5
    %v420 = vadd.f32 %v404, 0.5
    %v421 = vadd.f32 %v405, 0.5
    %v422 = vadd.f32 %v406, 0.5
    %v423 = vadd.f32 %v407, 0.5
    %v424 = vadd.f32 %v408, 0.5
    %v425 = vadd.f32 %v409, 0.5
    %v426 = vadd.f32 %v410, 0.5
    %v427 = vadd.f32 %v411, 0.5
    %v428 = vadd.f32 %v412, 0.5
    %v429 = vadd.f32 %v413, 0.5
    %v430 = vadd.f32 %v414, 0.5
    %v431 = vadd.f32 %v415, 0.5
    %v432 = vmul.f32 %v290, %v416
    %v433 = vmul.f32 %v294, %v417
    %v434 = vmul.f32 %v300, %v418
    %v435 = vmul.f32 %v304, %v419
    %v436 = vmul.f32 %v310, %v420
    %v437 = vmul.f32 %v314, %v421
    %v438 = vmul.f32 %v320, %v422
    %v439 = vmul.f32 %v324, %v423
    %v440 = vmul.f32 %v330, %v424
    %v441 = vmul.f32 %v334, %v425
    %v442 = vmul.f32 %v340, %v426
    %v443 = vmul.f32 %v344, %v427
    %v444 = vmul.f32 %v350, %v428
    %v445 = vmul.f32 %v354, %v429
    %v446 = vmul.f32 %v360, %v430
    %v447 = vmul.f32 %v364, %v431
    %v448 = vmul.f32 %v292, 0.5
    %v449 = vmul.f32 %v296, 0.5
    %v450 = vmul.f32 %v302, 0.5
    %v451 = vmul.f32 %v306, 0.5
    %v452 = vmul.f32 %v312, 0.5
    %v453 = vmul.f32 %v316, 0.5
    %v454 = vmul.f32 %v322, 0.5
    %v455 = vmul.f32 %v326, 0.5
    %v456 = vmul.f32 %v332, 0.5
    %v457 = vmul.f32 %v336, 0.5
    %v458 = vmul.f32 %v342, 0.5
    %v459 = vmul.f32 %v346, 0.5
    %v460 = vmul.f32 %v352, 0.5
    %v461 = vmul.f32 %v356, 0.5
    %v462 = vmul.f32 %v362, 0.5
    %v463 = vmul.f32 %v366, 0.5
    %v464 = vtanh.pop %v448
    %v465 = vtanh.pop %v449
    %v466 = vtanh.pop %v450
    %v467 = vtanh.pop %v451
    %v468 = vtanh.pop %v452
    %v469 = vtanh.pop %v453
    %v470 = vtanh.pop %v454
    %v471 = vtanh.pop %v455
    %v472 = vtanh.pop %v456
    %v473 = vtanh.pop %v457
    %v474 = vtanh.pop %v458
    %v475 = vtanh.pop %v459
    %v476 = vtanh.pop %v460
    %v477 = vtanh.pop %v461
    %v478 = vtanh.pop %v462
    %v479 = vtanh.pop %v463
    %v480 = vmul.f32 %v464, 0.5
    %v481 = vmul.f32 %v465, 0.5
    %v482 = vmul.f32 %v466, 0.5
    %v483 = vmul.f32 %v467, 0.5
    %v484 = vmul.f32 %v468, 0.5
    %v485 = vmul.f32 %v469, 0.5
    %v486 = vmul.f32 %v470, 0.5
    %v487 = vmul.f32 %v471, 0.5
    %v488 = vmul.f32 %v472, 0.5
    %v489 = vmul.f32 %v473, 0.5
    %v490 = vmul.f32 %v474, 0.5
    %v491 = vmul.f32 %v475, 0.5
    %v492 = vmul.f32 %v476, 0.5
    %v493 = vmul.f32 %v477, 0.5
    %v494 = vmul.f32 %v478, 0.5
    %v495 = vmul.f32 %v479, 0.5
    %v496 = vadd.f32 %v480, 0.5
    %v497 = vadd.f32 %v481, 0.5
    %v498 = vadd.f32 %v482, 0.5
    %v499 = vadd.f32 %v483, 0.5
    %v500 = vadd.f32 %v484, 0.5
    %v501 = vadd.f32 %v485, 0.5
    %v502 = vadd.f32 %v486, 0.5
    %v503 = vadd.f32 %v487, 0.5
    %v504 = vadd.f32 %v488, 0.5
    %v505 = vadd.f32 %v489, 0.5
    %v506 = vadd.f32 %v490, 0.5
    %v507 = vadd.f32 %v491, 0.5
    %v508 = vadd.f32 %v492, 0.5
    %v509 = vadd.f32 %v493, 0.5
    %v510 = vadd.f32 %v494, 0.5
    %v511 = vadd.f32 %v495, 0.5
    %v512 = vmul.f32 %v496, %v432
    %v513 = vmul.f32 %v497, %v433
    %v514 = vmul.f32 %v498, %v434
    %v515 = vmul.f32 %v499, %v435
    %v516 = vmul.f32 %v500, %v436
    %v517 = vmul.f32 %v501, %v437
    %v518 = vmul.f32 %v502, %v438
    %v519 = vmul.f32 %v503, %v439
    %v520 = vmul.f32 %v504, %v440
    %v521 = vmul.f32 %v505, %v441
    %v522 = vmul.f32 %v506, %v442
    %v523 = vmul.f32 %v507, %v443
    %v524 = vmul.f32 %v508, %v444
    %v525 = vmul.f32 %v509, %v445
    %v526 = vmul.f32 %v510, %v446
    %v527 = vmul.f32 %v511, %v447
    %528 = vst [vmem:[#allocation2] sm:$0xff] %v512
    %529 = vst [vmem:[#allocation2 + $0x8] sm:$0xff] %v513
    %530 = vst [vmem:[#allocation2 + $0x10] sm:$0xff] %v514
    %531 = vst [vmem:[#allocation2 + $0x18] sm:$0xff] %v515
    %532 = vst [vmem:[#allocation2 + $0x20] sm:$0xff] %v516
    %533 = vst [vmem:[#allocation2 + $0x28] sm:$0xff] %v517
    %534 = vst [vmem:[#allocation2 + $0x30] sm:$0xff] %v518
    %535 = vst [vmem:[#allocation2 + $0x38] sm:$0xff] %v519
    %536 = vst [vmem:[#allocation2 + $0x40] sm:$0xff] %v520
    %537 = vst [vmem:[#allocation2 + $0x48] sm:$0xff] %v521
    %538 = vst [vmem:[#allocation2 + $0x50] sm:$0xff] %v522
    %539 = vst [vmem:[#allocation2 + $0x58] sm:$0xff] %v523
    %540 = vst [vmem:[#allocation2 + $0x60] sm:$0xff] %v524
    %541 = vst [vmem:[#allocation2 + $0x68] sm:$0xff] %v525
    %542 = vst [vmem:[#allocation2 + $0x70] sm:$0xff] %v526
    %543 = vst [vmem:[#allocation2 + $0x78] sm:$0xff] %v527
    %v544 = vsub.f32 1.0, %v496
    %v545 = vsub.f32 1.0, %v497
    %v546 = vsub.f32 1.0, %v498
    %v547 = vsub.f32 1.0, %v499
    %v548 = vsub.f32 1.0, %v500
    %v549 = vsub.f32 1.0, %v501
    %v550 = vsub.f32 1.0, %v502
    %v551 = vsub.f32 1.0, %v503
    %v552 = vsub.f32 1.0, %v504
    %v553 = vsub.f32 1.0, %v505
    %v554 = vsub.f32 1.0, %v506
    %v555 = vsub.f32 1.0, %v507
    %v556 = vsub.f32 1.0, %v508
    %v557 = vsub.f32 1.0, %v509
    %v558 = vsub.f32 1.0, %v510
    %v559 = vsub.f32 1.0, %v511
    %560 = vst [vmem:[#allocation3] sm:$0xff] %v544
    %561 = vst [vmem:[#allocation3 + $0x8] sm:$0xff] %v545
    %562 = vst [vmem:[#allocation3 + $0x10] sm:$0xff] %v546
    %563 = vst [vmem:[#allocation3 + $0x18] sm:$0xff] %v547
    %564 = vst [vmem:[#allocation3 + $0x20] sm:$0xff] %v548
    %565 = vst [vmem:[#allocation3 + $0x28] sm:$0xff] %v549
    %566 = vst [vmem:[#allocation3 + $0x30] sm:$0xff] %v550
    %567 = vst [vmem:[#allocation3 + $0x38] sm:$0xff] %v551
    %568 = vst [vmem:[#allocation3 + $0x40] sm:$0xff] %v552
    %569 = vst [vmem:[#allocation3 + $0x48] sm:$0xff] %v553
    %570 = vst [vmem:[#allocation3 + $0x50] sm:$0xff] %v554
    %571 = vst [vmem:[#allocation3 + $0x58] sm:$0xff] %v555
    %572 = vst [vmem:[#allocation3 + $0x60] sm:$0xff] %v556
    %573 = vst [vmem:[#allocation3 + $0x68] sm:$0xff] %v557
    %574 = vst [vmem:[#allocation3 + $0x70] sm:$0xff] %v558
    %575 = vst [vmem:[#allocation3 + $0x78] sm:$0xff] %v559
    %v576 = vld [vmem:[#allocation4] sm:$0xff]
    %v577 = vld [vmem:[#allocation4 + $0x8] sm:$0xff]
    %v578 = vld [vmem:[#allocation2] sm:$0xff]
    %v579 = vld [vmem:[#allocation2 + $0x8] sm:$0xff]
    %v580 = vld [vmem:[#allocation3] sm:$0xff]
    %v581 = vld [vmem:[#allocation3 + $0x8] sm:$0xff]
    %v582 = vmul.f32 %v580, %v576
    %v583 = vmul.f32 %v581, %v577
    %v584 = vadd.f32 %v578, %v582
    %v585 = vadd.f32 %v579, %v583
    %v586 = vpack.c.bf16 %v585, %v584
    %v588 = vunpack.c.l.b16 %v586
    %v589 = vunpack.c.h.b16 %v586
    %v590 = vpack.c.b16 %v588, %v588
    %v591 = vpack.c.b16 %v589, %v589
    %594 = vst [vmem:[#allocation13] sm:$0xf] %v590
    %595 = vst [vmem:[#allocation13 + $0x4] sm:$0xf] %v591
    %s596 = scalar_lea.vmem [#allocation2], 16
    %v597 = vld [vmem:[%s596] sm:$0xff]
    %v598 = vld [vmem:[%s596 + $0x8] sm:$0xff]
    %s599 = scalar_lea.vmem [#allocation3], 16
    %v600 = vld [vmem:[%s599] sm:$0xff]
    %v601 = vld [vmem:[%s599 + $0x8] sm:$0xff]
    %v602 = vmul.f32 %v600, %v584
    %v603 = vmul.f32 %v601, %v585
    %v604 = vadd.f32 %v597, %v602
    %v605 = vadd.f32 %v598, %v603
    %v606 = vpack.c.bf16 %v605, %v604
    %v608 = vunpack.c.l.b16 %v606
    %v609 = vunpack.c.h.b16 %v606
    %v610 = vpack.c.b16 %v608, %v608
    %v611 = vpack.c.b16 %v609, %v609
    %s614 = scalar_lea.vmem [#allocation13], 8
    %615 = vst [vmem:[%s614] sm:$0xf] %v610
    %616 = vst [vmem:[%s614 + $0x4] sm:$0xf] %v611
    %s617 = scalar_lea.vmem [#allocation2], 32
    %v618 = vld [vmem:[%s617] sm:$0xff]
    %v619 = vld [vmem:[%s617 + $0x8] sm:$0xff]
    %s620 = scalar_lea.vmem [#allocation3], 32
    %v621 = vld [vmem:[%s620] sm:$0xff]
    %v622 = vld [vmem:[%s620 + $0x8] sm:$0xff]
    %v623 = vmul.f32 %v621, %v604
    %v624 = vmul.f32 %v622, %v605
    %v625 = vadd.f32 %v618, %v623
    %v626 = vadd.f32 %v619, %v624
    %v627 = vpack.c.bf16 %v626, %v625
    %v629 = vunpack.c.l.b16 %v627
    %v630 = vunpack.c.h.b16 %v627
    %v631 = vpack.c.b16 %v629, %v629
    %v632 = vpack.c.b16 %v630, %v630
    %s635 = scalar_lea.vmem [#allocation13], 16
    %636 = vst [vmem:[%s635] sm:$0xf] %v631
    %637 = vst [vmem:[%s635 + $0x4] sm:$0xf] %v632
    %s638 = scalar_lea.vmem [#allocation2], 48
    %v639 = vld [vmem:[%s638] sm:$0xff]
    %v640 = vld [vmem:[%s638 + $0x8] sm:$0xff]
    %s641 = scalar_lea.vmem [#allocation3], 48
    %v642 = vld [vmem:[%s641] sm:$0xff]
    %v643 = vld [vmem:[%s641 + $0x8] sm:$0xff]
    %v644 = vmul.f32 %v642, %v625
    %v645 = vmul.f32 %v643, %v626
    %v646 = vadd.f32 %v639, %v644
    %v647 = vadd.f32 %v640, %v645
    %v648 = vpack.c.bf16 %v647, %v646
    %v650 = vunpack.c.l.b16 %v648
    %v651 = vunpack.c.h.b16 %v648
    %v652 = vpack.c.b16 %v650, %v650
    %v653 = vpack.c.b16 %v651, %v651
    %s656 = scalar_lea.vmem [#allocation13], 24
    %657 = vst [vmem:[%s656] sm:$0xf] %v652
    %658 = vst [vmem:[%s656 + $0x4] sm:$0xf] %v653
    %s659 = scalar_lea.vmem [#allocation2], 64
    %v660 = vld [vmem:[%s659] sm:$0xff]
    %v661 = vld [vmem:[%s659 + $0x8] sm:$0xff]
    %s662 = scalar_lea.vmem [#allocation3], 64
    %v663 = vld [vmem:[%s662] sm:$0xff]
    %v664 = vld [vmem:[%s662 + $0x8] sm:$0xff]
    %v665 = vmul.f32 %v663, %v646
    %v666 = vmul.f32 %v664, %v647
    %v667 = vadd.f32 %v660, %v665
    %v668 = vadd.f32 %v661, %v666
    %v669 = vpack.c.bf16 %v668, %v667
    %v671 = vunpack.c.l.b16 %v669
    %v672 = vunpack.c.h.b16 %v669
    %v673 = vpack.c.b16 %v671, %v671
    %v674 = vpack.c.b16 %v672, %v672
    %s677 = scalar_lea.vmem [#allocation13], 32
    %678 = vst [vmem:[%s677] sm:$0xf] %v673
    %679 = vst [vmem:[%s677 + $0x4] sm:$0xf] %v674
    %s680 = scalar_lea.vmem [#allocation2], 80
    %v681 = vld [vmem:[%s680] sm:$0xff]
    %v682 = vld [vmem:[%s680 + $0x8] sm:$0xff]
    %s683 = scalar_lea.vmem [#allocation3], 80
    %v684 = vld [vmem:[%s683] sm:$0xff]
    %v685 = vld [vmem:[%s683 + $0x8] sm:$0xff]
    %v686 = vmul.f32 %v684, %v667
    %v687 = vmul.f32 %v685, %v668
    %v688 = vadd.f32 %v681, %v686
    %v689 = vadd.f32 %v682, %v687
    %v690 = vpack.c.bf16 %v689, %v688
    %v692 = vunpack.c.l.b16 %v690
    %v693 = vunpack.c.h.b16 %v690
    %v694 = vpack.c.b16 %v692, %v692
    %v695 = vpack.c.b16 %v693, %v693
    %s698 = scalar_lea.vmem [#allocation13], 40
    %699 = vst [vmem:[%s698] sm:$0xf] %v694
    %700 = vst [vmem:[%s698 + $0x4] sm:$0xf] %v695
    %s701 = scalar_lea.vmem [#allocation2], 96
    %v702 = vld [vmem:[%s701] sm:$0xff]
    %v703 = vld [vmem:[%s701 + $0x8] sm:$0xff]
    %s704 = scalar_lea.vmem [#allocation3], 96
    %v705 = vld [vmem:[%s704] sm:$0xff]
    %v706 = vld [vmem:[%s704 + $0x8] sm:$0xff]
    %v707 = vmul.f32 %v705, %v688
    %v708 = vmul.f32 %v706, %v689
    %v709 = vadd.f32 %v702, %v707
    %v710 = vadd.f32 %v703, %v708
    %v711 = vpack.c.bf16 %v710, %v709
    %v713 = vunpack.c.l.b16 %v711
    %v714 = vunpack.c.h.b16 %v711
    %v715 = vpack.c.b16 %v713, %v713
    %v716 = vpack.c.b16 %v714, %v714
    %s719 = scalar_lea.vmem [#allocation13], 48
    %720 = vst [vmem:[%s719] sm:$0xf] %v715
    %721 = vst [vmem:[%s719 + $0x4] sm:$0xf] %v716
    %s722 = scalar_lea.vmem [#allocation2], 112
    %v723 = vld [vmem:[%s722] sm:$0xff]
    %v724 = vld [vmem:[%s722 + $0x8] sm:$0xff]
    %s725 = scalar_lea.vmem [#allocation3], 112
    %v726 = vld [vmem:[%s725] sm:$0xff]
    %v727 = vld [vmem:[%s725 + $0x8] sm:$0xff]
    %v728 = vmul.f32 %v726, %v709
    %v729 = vmul.f32 %v727, %v710
    %v730 = vadd.f32 %v723, %v728
    %v731 = vadd.f32 %v724, %v729
    %v732 = vpack.c.bf16 %v731, %v730
    %v734 = vunpack.c.l.b16 %v732
    %v735 = vunpack.c.h.b16 %v732
    %v736 = vpack.c.b16 %v734, %v734
    %v737 = vpack.c.b16 %v735, %v735
    %s740 = scalar_lea.vmem [#allocation13], 56
    %741 = vst [vmem:[%s740] sm:$0xf] %v736
    %742 = vst [vmem:[%s740 + $0x4] sm:$0xf] %v737
    %743 = vst [vmem:[#allocation4] sm:$0xff] %v730
    %744 = vst [vmem:[#allocation4 + $0x8] sm:$0xff] %v731
    // Predicated region
    $region38: #{tpu_custom_call.1} parent=1 // pred_check
      %p745 = pneg %p75
    $region39: #{tpu_custom_call.1} parent=1 // pred_check_branch
      %747 = sbr.rel (%p745) target = $region41
    $region40: #{tpu_custom_call.1} parent=1 // pred_region
      %v748 = vld [vmem:[#allocation4] sm:$0xff]
      %v749 = vld [vmem:[#allocation4 + $0x8] sm:$0xff]
      %750 = vst [vmem:[#allocation14] sm:$0xff] %v748
      %751 = vst [vmem:[#allocation14 + $0x8] sm:$0xff] %v749
    $region41: #{tpu_custom_call.1} parent=1 // pred_fallthru
      _
    // Predicated region
    $region42: #{tpu_custom_call.1} parent=1 // pred_check
      _
    $region43: #{tpu_custom_call.1} parent=1 // pred_check_branch
      %753 = sbr.rel (0) target = $region45
    $region44: #{tpu_custom_call.1} parent=1 // pred_region
      %s755 = ssub.s32 1024, 1024
      %756 = vsyncadd [#allocation7], %s755
      %s757 = sshll.u32 [#allocation13], 4
      %s758 = int_to_ptr.vmem [resolvable:$true] %s757
      %763 = dma.vmem_to_hbm [thread:$0]  %s758, 1024, %s4, [#allocation7], 64, 64, 4
    $region45: #{tpu_custom_call.1} parent=1 // pred_fallthru
      _
    // Predicated region
    $region46: #{tpu_custom_call.1} parent=1 // pred_check
      _
    $region47: #{tpu_custom_call.1} parent=1 // pred_check_branch
      %765 = sbr.rel (0) target = $region49
    $region48: #{tpu_custom_call.1} parent=1 // pred_region
      %s767 = ssub.s32 256, 256
      %768 = vsyncadd [#allocation15], %s767
      %s769 = sshll.u32 [#allocation14], 4
      %s770 = int_to_ptr.vmem [resolvable:$true] %s769
      %775 = dma.vmem_to_hbm [thread:$0]  %s770, 256, %s5, [#allocation15], 128, 128, 8
    $region49: #{tpu_custom_call.1} parent=1 // pred_fallthru
      _
    // Predicated region
    $region50: #{tpu_custom_call.1} parent=1 // pred_check
      _
    $region51: #{tpu_custom_call.1} parent=1 // pred_check_branch
      %777 = sbr.rel (0) target = $region53
    $region52: #{tpu_custom_call.1} parent=1 // pred_region
      %778 = dma.done [#allocation7], 1024
    $region53: #{tpu_custom_call.1} parent=1 // pred_fallthru
      _
    // Predicated region
    $region54: #{tpu_custom_call.1} parent=1 // pred_check
      _
    $region55: #{tpu_custom_call.1} parent=1 // pred_check_branch
      %780 = sbr.rel (0) target = $region57
    $region56: #{tpu_custom_call.1} parent=1 // pred_region
      %781 = dma.done [#allocation15], 256
    $region57: #{tpu_custom_call.1} parent=1 // pred_fallthru
      _
    %782 = vsyncpa [#allocation6], 1
    %783 = vsyncpa [#allocation9], 1
    %784 = vsyncpa [#allocation12], 1
    %785 = vsyncpa [#allocation7], 1
    %786 = vsyncpa [#allocation15], 1

</llo_original>
